<compile_context>
chip_gen: v7x
topology: tpu7x:2x2x1
jax: 0.10.0
libtpu: 0.0.40
codegen_flags: <defaults>
</compile_context>

<pallas_src>
import functools

import jax
import jax.numpy as jnp
from jax.experimental import pallas as pl
from jax.experimental.pallas import tpu as pltpu


def actor_kernel(obs_ref, goal_ref,
                 w1o_ref, w1g_ref, b1_ref,
                 w2_ref, b2_ref,
                 w3_ref, b3_ref,
                 w4_ref, b4_ref,
                 out_ref,
                 *, max_action, half):
    # Layer 1 with the torch.cat fused: [obs|goal] @ W1 == obs@W1[:o] + goal@W1[o:]
    h = (jnp.dot(obs_ref[...], w1o_ref[...], preferred_element_type=jnp.float32)
         + jnp.dot(goal_ref[...], w1g_ref[...], preferred_element_type=jnp.float32)
         + b1_ref[...])
    h = jnp.maximum(h, 0.0)

    h = jnp.dot(h, w2_ref[...], preferred_element_type=jnp.float32) + b2_ref[...]
    h = jnp.maximum(h, 0.0)

    h = jnp.dot(h, w3_ref[...], preferred_element_type=jnp.float32) + b3_ref[...]
    h = jnp.maximum(h, 0.0)

    # Action head: W4/b4 are duplicated into lanes [0, half) and [half, 2*half),
    # so a single matmul yields `pre` in both halves.  Lanes < half get the
    # tanh-squashed actions; lanes >= half keep the raw pre-activation.
    z = jnp.dot(h, w4_ref[...], preferred_element_type=jnp.float32) + b4_ref[...]
    lane = jax.lax.broadcasted_iota(jnp.int32, z.shape, dimension=1)
    out_ref[...] = jnp.where(lane < half,
                             max_action * jnp.tanh(z),
                             z).astype(out_ref.dtype)


@functools.partial(jax.jit, static_argnames=("max_action",))
def actor_forward(obs, goal, params, *, max_action):
    """Run the actor MLP. obs: (B, obs_dim), goal: (B, goal_dim)."""
    B, obs_dim = obs.shape
    goal_dim = goal.shape[1]
    hidden = params["w1"].shape[1]
    act_dim = params["w4"].shape[1]

    # Packed lane-dense output layout: [ actions (half lanes) | pre (half lanes) ].
    half = max(64, -(-act_dim // 64) * 64)     # multiple of 64, >= act_dim
    out_pad = 2 * half                         # multiple of 128 -> unmasked vst

    # ---- batch tiling -------------------------------------------------------
    TB = 256
    if B < TB:
        TB = max(8, -(-B // 8) * 8)            # round small batches up to x8
    B_pad = -(-B // TB) * TB
    if B_pad != B:
        obs = jnp.pad(obs, ((0, B_pad - B), (0, 0)))
        goal = jnp.pad(goal, ((0, B_pad - B), (0, 0)))
    grid = (B_pad // TB,)

    # ---- weight prep: split W1 (fused concat), duplicate/lane-pad the head --
    w1o = params["w1"][:obs_dim]
    w1g = params["w1"][obs_dim:]
    w4p = jnp.zeros((hidden, out_pad), jnp.float32)
    w4p = w4p.at[:, :act_dim].set(params["w4"])
    w4p = w4p.at[:, half:half + act_dim].set(params["w4"])
    b4p = jnp.zeros((1, out_pad), jnp.float32)
    b4p = b4p.at[:, :act_dim].set(params["b4"])
    b4p = b4p.at[:, half:half + act_dim].set(params["b4"])

    # ---- BlockSpecs ---------------------------------------------------------
    def resident(shape):
        # Whole-array block whose block index never changes -> stays in VMEM.
        return pl.BlockSpec(shape, lambda i: (0,) * len(shape))

    in_specs = [
        pl.BlockSpec((TB, obs_dim), lambda i: (i, 0)),     # obs tile (streamed)
        pl.BlockSpec((TB, goal_dim), lambda i: (i, 0)),    # goal tile (streamed)
        resident((obs_dim, hidden)),                       # W1[:obs]
        resident((goal_dim, hidden)),                      # W1[obs:]
        resident((1, hidden)),                             # b1
        resident((hidden, hidden)), resident((1, hidden)),     # W2, b2
        resident((hidden, hidden)), resident((1, hidden)),     # W3, b3
        resident((hidden, out_pad)), resident((1, out_pad)),   # W4, b4 (packed)
    ]
    out_spec = pl.BlockSpec((TB, out_pad), lambda i: (i, 0))

    kernel = functools.partial(actor_kernel,
                               max_action=float(max_action), half=half)

    out = pl.pallas_call(
        kernel,
        grid=grid,
        in_specs=in_specs,
        out_specs=out_spec,
        out_shape=jax.ShapeDtypeStruct((B_pad, out_pad), jnp.float32),
        compiler_params=pltpu.CompilerParams(
            dimension_semantics=("parallel",)),   # megacore split on v7x
    )(
        obs, goal,
        w1o, w1g, params["b1"],
        params["w2"], params["b2"],
        params["w3"], params["b3"],
        w4p, b4p,
    )

    # Slice batch padding and unpack the two logical outputs in the wrapper.
    actions = out[:B, :act_dim]
    pre = out[:B, half:half + act_dim]
    return actions, pre


def init_params(key, obs_dim, goal_dim, act_dim, hidden=64):
    """Deterministic synthetic weights (shapes match the nn.Module __init__)."""
    ks = jax.random.split(key, 8)
    in_dim = obs_dim + goal_dim

    def linear(kw, kb, fan_in, fan_out):
        w = jax.random.normal(kw, (fan_in, fan_out), jnp.float32) * (1.0 / jnp.sqrt(fan_in))
        b = 0.01 * jax.random.normal(kb, (1, fan_out), jnp.float32)
        return w, b

    w1, b1 = linear(ks[0], ks[1], in_dim, hidden)
    w2, b2 = linear(ks[2], ks[3], hidden, hidden)
    w3, b3 = linear(ks[4], ks[5], hidden, hidden)
    w4, b4 = linear(ks[6], ks[7], hidden, act_dim)
    return dict(w1=w1, b1=b1, w2=w2, b2=b2, w3=w3, b3=b3, w4=w4, b4=b4)


def reference_forward(x, goal, params, max_action):
    xg = jnp.concatenate([x, goal], axis=-1)
    h = jax.nn.relu(xg @ params["w1"] + params["b1"])
    h = jax.nn.relu(h @ params["w2"] + params["b2"])
    h = jax.nn.relu(h @ params["w3"] + params["b3"])
    pre = h @ params["w4"] + params["b4"]
    return max_action * jnp.tanh(pre), pre


if __name__ == "__main__":
    # env_params: obs=10, goal=3, action=4, action_max=1.0 ; batch=8
    obs_dim, goal_dim, act_dim = 10, 3, 4
    max_action = 1.0
    B = 8

    key = jax.random.PRNGKey(0)
    k_obs, k_goal, k_par = jax.random.split(key, 3)

    x = jax.random.normal(k_obs, (B, obs_dim), jnp.float32)
    goal = jax.random.normal(k_goal, (B, goal_dim), jnp.float32)
    params = init_params(k_par, obs_dim, goal_dim, act_dim)

    actions, pre = actor_forward(x, goal, params, max_action=max_action)
    actions = jax.block_until_ready(actions)
    pre = jax.block_until_ready(pre)

    # Sanity check against a pure-JAX reference.
    ref_actions, ref_pre = reference_forward(x, goal, params, max_action)
    assert actions.shape == (B, act_dim) and pre.shape == (B, act_dim)
    assert jnp.allclose(actions, ref_actions, atol=1e-5, rtol=1e-5)
    assert jnp.allclose(pre, ref_pre, atol=1e-5, rtol=1e-5)

    print("KERNEL_OK")
</pallas_src>

<mosaic_0001>
module attributes {stable_mosaic.version = 11 : i64} {
  func.func @actor_kernel(%arg0: i32, %arg1: memref<8x10xf32, #tpu.memory_space<vmem>>, %arg2: memref<8x3xf32, #tpu.memory_space<vmem>>, %arg3: memref<10x64xf32, #tpu.memory_space<vmem>>, %arg4: memref<3x64xf32, #tpu.memory_space<vmem>>, %arg5: memref<1x64xf32, #tpu.memory_space<vmem>>, %arg6: memref<64x64xf32, #tpu.memory_space<vmem>>, %arg7: memref<1x64xf32, #tpu.memory_space<vmem>>, %arg8: memref<64x64xf32, #tpu.memory_space<vmem>>, %arg9: memref<1x64xf32, #tpu.memory_space<vmem>>, %arg10: memref<64x128xf32, #tpu.memory_space<vmem>>, %arg11: memref<1x128xf32, #tpu.memory_space<vmem>>, %arg12: memref<8x128xf32, #tpu.memory_space<vmem>>) attributes {dimension_semantics = [#tpu.dimension_semantics<parallel>], iteration_bounds = array<i64: 1>, scalar_prefetch = 0 : i64, scratch_operands = 0 : i64, tpu.core_type = #tpu.core_type<tc>, window_params = [{transform_indices = @transform_0, window_bounds = array<i64: 8, 10>}, {transform_indices = @transform_1, window_bounds = array<i64: 8, 3>}, {pipeline_mode = #tpu.pipeline_mode<synchronous>, transform_indices = @transform_2, window_bounds = array<i64: 10, 64>}, {pipeline_mode = #tpu.pipeline_mode<synchronous>, transform_indices = @transform_3, window_bounds = array<i64: 3, 64>}, {pipeline_mode = #tpu.pipeline_mode<synchronous>, transform_indices = @transform_4, window_bounds = array<i64: 1, 64>}, {pipeline_mode = #tpu.pipeline_mode<synchronous>, transform_indices = @transform_5, window_bounds = array<i64: 64, 64>}, {pipeline_mode = #tpu.pipeline_mode<synchronous>, transform_indices = @transform_6, window_bounds = array<i64: 1, 64>}, {pipeline_mode = #tpu.pipeline_mode<synchronous>, transform_indices = @transform_7, window_bounds = array<i64: 64, 64>}, {pipeline_mode = #tpu.pipeline_mode<synchronous>, transform_indices = @transform_8, window_bounds = array<i64: 1, 64>}, {pipeline_mode = #tpu.pipeline_mode<synchronous>, transform_indices = @transform_9, window_bounds = array<i64: 64, 128>}, {pipeline_mode = #tpu.pipeline_mode<synchronous>, transform_indices = @transform_10, window_bounds = array<i64: 1, 128>}, {transform_indices = @transform_11, window_bounds = array<i64: 8, 128>}]} {
    %c0 = arith.constant 0 : index
    %c0_0 = arith.constant 0 : index
    %0 = vector.load %arg1[%c0, %c0_0] : memref<8x10xf32, #tpu.memory_space<vmem>>, vector<8x10xf32>
    %c0_1 = arith.constant 0 : index
    %c0_2 = arith.constant 0 : index
    %1 = vector.load %arg3[%c0_1, %c0_2] : memref<10x64xf32, #tpu.memory_space<vmem>>, vector<10x64xf32>
    %cst = arith.constant dense<0.000000e+00> : vector<8x64xf32>
    %2 = tpu.matmul %0, %1, %cst {dimension_numbers = #tpu.dot_dimension_numbers<[1], [0], [0], [1], [0, 0, 1, 1], [], []>} : vector<8x10xf32>, vector<10x64xf32>, vector<8x64xf32> -> vector<8x64xf32>
    %c0_3 = arith.constant 0 : index
    %c0_4 = arith.constant 0 : index
    %3 = vector.load %arg2[%c0_3, %c0_4] : memref<8x3xf32, #tpu.memory_space<vmem>>, vector<8x3xf32>
    %c0_5 = arith.constant 0 : index
    %c0_6 = arith.constant 0 : index
    %4 = vector.load %arg4[%c0_5, %c0_6] : memref<3x64xf32, #tpu.memory_space<vmem>>, vector<3x64xf32>
    %cst_7 = arith.constant dense<0.000000e+00> : vector<8x64xf32>
    %5 = tpu.matmul %3, %4, %cst_7 {dimension_numbers = #tpu.dot_dimension_numbers<[1], [0], [0], [1], [0, 0, 1, 1], [], []>} : vector<8x3xf32>, vector<3x64xf32>, vector<8x64xf32> -> vector<8x64xf32>
    %6 = arith.addf %2, %5 : vector<8x64xf32>
    %c0_8 = arith.constant 0 : index
    %c0_9 = arith.constant 0 : index
    %7 = vector.load %arg5[%c0_8, %c0_9] : memref<1x64xf32, #tpu.memory_space<vmem>>, vector<1x64xf32>
    %8 = vector.broadcast %7 : vector<1x64xf32> to vector<8x64xf32>
    %9 = arith.addf %6, %8 : vector<8x64xf32>
    %cst_10 = arith.constant 0.000000e+00 : f32
    %10 = vector.broadcast %cst_10 : f32 to vector<8x64xf32>
    %11 = arith.maximumf %9, %10 : vector<8x64xf32>
    %c0_11 = arith.constant 0 : index
    %c0_12 = arith.constant 0 : index
    %12 = vector.load %arg6[%c0_11, %c0_12] : memref<64x64xf32, #tpu.memory_space<vmem>>, vector<64x64xf32>
    %cst_13 = arith.constant dense<0.000000e+00> : vector<8x64xf32>
    %13 = tpu.matmul %11, %12, %cst_13 {dimension_numbers = #tpu.dot_dimension_numbers<[1], [0], [0], [1], [0, 0, 1, 1], [], []>} : vector<8x64xf32>, vector<64x64xf32>, vector<8x64xf32> -> vector<8x64xf32>
    %c0_14 = arith.constant 0 : index
    %c0_15 = arith.constant 0 : index
    %14 = vector.load %arg7[%c0_14, %c0_15] : memref<1x64xf32, #tpu.memory_space<vmem>>, vector<1x64xf32>
    %15 = vector.broadcast %14 : vector<1x64xf32> to vector<8x64xf32>
    %16 = arith.addf %13, %15 : vector<8x64xf32>
    %cst_16 = arith.constant 0.000000e+00 : f32
    %17 = vector.broadcast %cst_16 : f32 to vector<8x64xf32>
    %18 = arith.maximumf %16, %17 : vector<8x64xf32>
    %c0_17 = arith.constant 0 : index
    %c0_18 = arith.constant 0 : index
    %19 = vector.load %arg8[%c0_17, %c0_18] : memref<64x64xf32, #tpu.memory_space<vmem>>, vector<64x64xf32>
    %cst_19 = arith.constant dense<0.000000e+00> : vector<8x64xf32>
    %20 = tpu.matmul %18, %19, %cst_19 {dimension_numbers = #tpu.dot_dimension_numbers<[1], [0], [0], [1], [0, 0, 1, 1], [], []>} : vector<8x64xf32>, vector<64x64xf32>, vector<8x64xf32> -> vector<8x64xf32>
    %c0_20 = arith.constant 0 : index
    %c0_21 = arith.constant 0 : index
    %21 = vector.load %arg9[%c0_20, %c0_21] : memref<1x64xf32, #tpu.memory_space<vmem>>, vector<1x64xf32>
    %22 = vector.broadcast %21 : vector<1x64xf32> to vector<8x64xf32>
    %23 = arith.addf %20, %22 : vector<8x64xf32>
    %cst_22 = arith.constant 0.000000e+00 : f32
    %24 = vector.broadcast %cst_22 : f32 to vector<8x64xf32>
    %25 = arith.maximumf %23, %24 : vector<8x64xf32>
    %c0_23 = arith.constant 0 : index
    %c0_24 = arith.constant 0 : index
    %26 = vector.load %arg10[%c0_23, %c0_24] : memref<64x128xf32, #tpu.memory_space<vmem>>, vector<64x128xf32>
    %cst_25 = arith.constant dense<0.000000e+00> : vector<8x128xf32>
    %27 = tpu.matmul %25, %26, %cst_25 {dimension_numbers = #tpu.dot_dimension_numbers<[1], [0], [0], [1], [0, 0, 1, 1], [], []>} : vector<8x64xf32>, vector<64x128xf32>, vector<8x128xf32> -> vector<8x128xf32>
    %c0_26 = arith.constant 0 : index
    %c0_27 = arith.constant 0 : index
    %28 = vector.load %arg11[%c0_26, %c0_27] : memref<1x128xf32, #tpu.memory_space<vmem>>, vector<1x128xf32>
    %29 = vector.broadcast %28 : vector<1x128xf32> to vector<8x128xf32>
    %30 = arith.addf %27, %29 : vector<8x128xf32>
    %31 = tpu.iota {dimensions = array<i32: 1>} : vector<8x128xi32>
    %c64_i32 = arith.constant 64 : i32
    %32 = vector.broadcast %c64_i32 : i32 to vector<8x128xi32>
    %33 = arith.cmpi slt, %31, %32 : vector<8x128xi32>
    %34 = math.tanh %30 : vector<8x128xf32>
    %cst_28 = arith.constant 1.000000e+00 : f32
    %35 = vector.broadcast %cst_28 : f32 to vector<8x128xf32>
    %36 = arith.mulf %35, %34 : vector<8x128xf32>
    %37 = arith.select %33, %36, %30 : vector<8x128xi1>, vector<8x128xf32>
    %c0_29 = arith.constant 0 : index
    %c0_30 = arith.constant 0 : index
    %38 = vector.load %arg12[%c0_29, %c0_30] : memref<8x128xf32, #tpu.memory_space<vmem>>, vector<8x128xf32>
    tpu.vector_store %arg12[%c0_29, %c0_30], %37 {strides = array<i32>} : memref<8x128xf32, #tpu.memory_space<vmem>>, vector<8x128xf32>,
    return
  }
  func.func @transform_0(%arg0: i32) -> (i32, i32) {
    %c0_i32 = arith.constant 0 : i32
    %c0_i32_0 = arith.constant 0 : i32
    return %arg0, %c0_i32 : i32, i32
  }
  func.func @transform_1(%arg0: i32) -> (i32, i32) {
    %c0_i32 = arith.constant 0 : i32
    %c0_i32_0 = arith.constant 0 : i32
    return %arg0, %c0_i32 : i32, i32
  }
  func.func @transform_2(%arg0: i32) -> (i32, i32) {
    %c0_i32 = arith.constant 0 : i32
    %c0_i32_0 = arith.constant 0 : i32
    %c0_i32_1 = arith.constant 0 : i32
    return %c0_i32, %c0_i32_0 : i32, i32
  }
  func.func @transform_3(%arg0: i32) -> (i32, i32) {
    %c0_i32 = arith.constant 0 : i32
    %c0_i32_0 = arith.constant 0 : i32
    %c0_i32_1 = arith.constant 0 : i32
    return %c0_i32, %c0_i32_0 : i32, i32
  }
  func.func @transform_4(%arg0: i32) -> (i32, i32) {
    %c0_i32 = arith.constant 0 : i32
    %c0_i32_0 = arith.constant 0 : i32
    %c0_i32_1 = arith.constant 0 : i32
    return %c0_i32, %c0_i32_0 : i32, i32
  }
  func.func @transform_5(%arg0: i32) -> (i32, i32) {
    %c0_i32 = arith.constant 0 : i32
    %c0_i32_0 = arith.constant 0 : i32
    %c0_i32_1 = arith.constant 0 : i32
    return %c0_i32, %c0_i32_0 : i32, i32
  }
  func.func @transform_6(%arg0: i32) -> (i32, i32) {
    %c0_i32 = arith.constant 0 : i32
    %c0_i32_0 = arith.constant 0 : i32
    %c0_i32_1 = arith.constant 0 : i32
    return %c0_i32, %c0_i32_0 : i32, i32
  }
  func.func @transform_7(%arg0: i32) -> (i32, i32) {
    %c0_i32 = arith.constant 0 : i32
    %c0_i32_0 = arith.constant 0 : i32
    %c0_i32_1 = arith.constant 0 : i32
    return %c0_i32, %c0_i32_0 : i32, i32
  }
  func.func @transform_8(%arg0: i32) -> (i32, i32) {
    %c0_i32 = arith.constant 0 : i32
    %c0_i32_0 = arith.constant 0 : i32
    %c0_i32_1 = arith.constant 0 : i32
    return %c0_i32, %c0_i32_0 : i32, i32
  }
  func.func @transform_9(%arg0: i32) -> (i32, i32) {
    %c0_i32 = arith.constant 0 : i32
    %c0_i32_0 = arith.constant 0 : i32
    %c0_i32_1 = arith.constant 0 : i32
    return %c0_i32, %c0_i32_0 : i32, i32
  }
  func.func @transform_10(%arg0: i32) -> (i32, i32) {
    %c0_i32 = arith.constant 0 : i32
    %c0_i32_0 = arith.constant 0 : i32
    %c0_i32_1 = arith.constant 0 : i32
    return %c0_i32, %c0_i32_0 : i32, i32
  }
  func.func @transform_11(%arg0: i32) -> (i32, i32) {
    %c0_i32 = arith.constant 0 : i32
    %c0_i32_0 = arith.constant 0 : i32
    return %arg0, %c0_i32 : i32, i32
  }
}

</mosaic_0001>

<llo_original>
// kernel: actor_forward.1
$region0: #{actor_forward.1}
  #allocation0 [shape = 'u32[]', space=smem, size = 0x4, offset = 0x4, fixed_abs, tag = 'smem constant byte address 0x4 - core index']
  #allocation1 [shape = 'u32[144,128]{1,0:T(1,128)}', space=vmem, size = 0x12000, scoped, tag = 'internal scratch']
  %s0 = inlined_call_operand.vmem [shape: f32[8,10], index: 0, kind: input, shape index: {}]
  %s1 = inlined_call_operand.vmem [shape: f32[8,3], index: 1, kind: input, shape index: {}]
  %s2 = inlined_call_operand.vmem [shape: f32[10,64], index: 2, kind: input, shape index: {}]
  %s3 = inlined_call_operand.vmem [shape: f32[3,64], index: 3, kind: input, shape index: {}]
  %s4 = inlined_call_operand.vmem [shape: f32[1,64], index: 4, kind: input, shape index: {}]
  %s5 = inlined_call_operand.vmem [shape: f32[64,64], index: 5, kind: input, shape index: {}]
  %s6 = inlined_call_operand.vmem [shape: f32[1,64], index: 6, kind: input, shape index: {}]
  %s7 = inlined_call_operand.vmem [shape: f32[64,64], index: 7, kind: input, shape index: {}]
  %s8 = inlined_call_operand.vmem [shape: f32[1,64], index: 8, kind: input, shape index: {}]
  %s9 = inlined_call_operand.vmem [shape: f32[64,128], index: 9, kind: input, shape index: {}]
  %s10 = inlined_call_operand.vmem [shape: f32[1,128], index: 10, kind: input, shape index: {}]
  %s11 = inlined_call_operand.vmem [shape: f32[8,128], index: 11, kind: output, shape index: {}]
  %s12 = sld [smem:[#allocation0]]
  $region54: #{actor_forward.1} parent=0
    _
  %s14 = ssub.s32 1, %s12
  %s15 = scalar_select 0, %s14, %s12
  // Predicated region
  $region2: #{actor_forward.1} parent=0 // pred_check
    _
  $region3: #{actor_forward.1} parent=0 // pred_check_branch
    %17 = sbr.rel (0) target = $region5
  $region4: #{actor_forward.1} parent=0 // pred_region
    _
  $region5: #{actor_forward.1} parent=0 // pred_fallthru
    _
  // Predicated region
  $region6: #{actor_forward.1} parent=0 // pred_check
    _
  $region7: #{actor_forward.1} parent=0 // pred_check_branch
    %19 = sbr.rel (0) target = $region9
  $region8: #{actor_forward.1} parent=0 // pred_region
    _
  $region9: #{actor_forward.1} parent=0 // pred_fallthru
    _
  // Predicated region
  $region10: #{actor_forward.1} parent=0 // pred_check
    _
  $region11: #{actor_forward.1} parent=0 // pred_check_branch
    %21 = sbr.rel (0) target = $region13
  $region12: #{actor_forward.1} parent=0 // pred_region
    _
  $region13: #{actor_forward.1} parent=0 // pred_fallthru
    _
  // Predicated region
  $region14: #{actor_forward.1} parent=0 // pred_check
    _
  $region15: #{actor_forward.1} parent=0 // pred_check_branch
    %23 = sbr.rel (0) target = $region17
  $region16: #{actor_forward.1} parent=0 // pred_region
    _
  $region17: #{actor_forward.1} parent=0 // pred_fallthru
    _
  // Predicated region
  $region18: #{actor_forward.1} parent=0 // pred_check
    _
  $region19: #{actor_forward.1} parent=0 // pred_check_branch
    %25 = sbr.rel (0) target = $region21
  $region20: #{actor_forward.1} parent=0 // pred_region
    _
  $region21: #{actor_forward.1} parent=0 // pred_fallthru
    _
  // Predicated region
  $region22: #{actor_forward.1} parent=0 // pred_check
    _
  $region23: #{actor_forward.1} parent=0 // pred_check_branch
    %27 = sbr.rel (0) target = $region25
  $region24: #{actor_forward.1} parent=0 // pred_region
    _
  $region25: #{actor_forward.1} parent=0 // pred_fallthru
    _
  // Predicated region
  $region26: #{actor_forward.1} parent=0 // pred_check
    _
  $region27: #{actor_forward.1} parent=0 // pred_check_branch
    %29 = sbr.rel (0) target = $region29
  $region28: #{actor_forward.1} parent=0 // pred_region
    _
  $region29: #{actor_forward.1} parent=0 // pred_fallthru
    _
  // Predicated region
  $region30: #{actor_forward.1} parent=0 // pred_check
    _
  $region31: #{actor_forward.1} parent=0 // pred_check_branch
    %31 = sbr.rel (0) target = $region33
  $region32: #{actor_forward.1} parent=0 // pred_region
    _
  $region33: #{actor_forward.1} parent=0 // pred_fallthru
    _
  // Predicated region
  $region34: #{actor_forward.1} parent=0 // pred_check
    _
  $region35: #{actor_forward.1} parent=0 // pred_check_branch
    %33 = sbr.rel (0) target = $region37
  $region36: #{actor_forward.1} parent=0 // pred_region
    _
  $region37: #{actor_forward.1} parent=0 // pred_fallthru
    _
  // Predicated region
  $region38: #{actor_forward.1} parent=0 // pred_check
    _
  $region39: #{actor_forward.1} parent=0 // pred_check_branch
    %35 = sbr.rel (0) target = $region41
  $region40: #{actor_forward.1} parent=0 // pred_region
    _
  $region41: #{actor_forward.1} parent=0 // pred_fallthru
    _
  // Predicated region
  $region42: #{actor_forward.1} parent=0 // pred_check
    _
  $region43: #{actor_forward.1} parent=0 // pred_check_branch
    %37 = sbr.rel (0) target = $region45
  $region44: #{actor_forward.1} parent=0 // pred_region
    _
  $region45: #{actor_forward.1} parent=0 // pred_fallthru
    _
  %v38 = vld [vmem:[%s0] sm:$0xff]
  %v39 = vld [vmem:[%s2] sm:$0xff]
  %v40 = vld [vmem:[%s2 + $0x8] sm:$0x3]
  %v41 = vld [vmem:[%s1] sm:$0xff]
  %v42 = vld [vmem:[%s3] sm:$0x7]
  %vm43 = vcmask 23552
  %v45 = vsel %vm43, %v41, 0
  %vm47 = vcmask 1042432
  %v49 = vsel %vm47, %v42, 0
  %51 = vmatprep.subr.mxu0 0.0
  %52 = vmatpush1.msra.mxu0 %v49
  %53 = vmatprep.subr.mxu0 0.0
  %54 = vmatpush1.msra.mxu0 0.0
  %55 = vmatprep.subr.mxu0 0.0
  %56 = vmatpush1.msra.mxu0 0.0
  %57 = vmatprep.subr.mxu0 0.0
  %58 = vmatpush1.msra.mxu0 0.0
  %59 = vmatprep.subr.mxu0 0.0
  %60 = vmatpush1.msra.mxu0 0.0
  %61 = vmatprep.subr.mxu0 0.0
  %62 = vmatpush1.msra.mxu0 0.0
  %63 = vmatprep.subr.mxu0 0.0
  %64 = vmatpush1.msra.mxu0 0.0
  %65 = vmatprep.subr.mxu0 0.0
  %66 = vmatpush1.msra.mxu0 0.0
  %67 = vmatprep.subr.mxu0 0.0
  %68 = vmatpush1.msra.mxu0 0.0
  %69 = vmatprep.subr.mxu0 0.0
  %70 = vmatpush1.msra.mxu0 0.0
  %71 = vmatprep.subr.mxu0 0.0
  %72 = vmatpush1.msra.mxu0 0.0
  %73 = vmatprep.subr.mxu0 0.0
  %74 = vmatpush1.msra.mxu0 0.0
  %75 = vmatprep.subr.mxu0 0.0
  %76 = vmatpush1.msra.mxu0 0.0
  %77 = vmatprep.subr.mxu0 0.0
  %78 = vmatpush1.msra.mxu0 0.0
  %79 = vmatprep.subr.mxu0 0.0
  %80 = vmatpush1.msra.mxu0 0.0
  %81 = vmatprep.subr.mxu0 0.0
  %82 = vmatpush1.msra.mxu0 0.0
  %83 = vmatprep.subr.mxu0 0.0
  %84 = vmatpush1.msra.mxu0 0.0
  %85 = vmatprep.subr.mxu0 0.0
  %86 = vmatpush1.msra.mxu0 0.0
  %87 = vmatprep.subr.mxu0 0.0
  %88 = vmatpush1.msra.mxu0 0.0
  %89 = vmatprep.subr.mxu0 0.0
  %90 = vmatpush1.msra.mxu0 0.0
  %91 = vmatprep.subr.mxu0 0.0
  %92 = vmatpush1.msra.mxu0 0.0
  %93 = vmatprep.subr.mxu0 0.0
  %94 = vmatpush1.msra.mxu0 0.0
  %95 = vmatprep.subr.mxu0 0.0
  %96 = vmatpush1.msra.mxu0 0.0
  %97 = vmatprep.subr.mxu0 0.0
  %98 = vmatpush1.msra.mxu0 0.0
  %99 = vmatprep.subr.mxu0 0.0
  %100 = vmatpush1.msra.mxu0 0.0
  %101 = vmatprep.subr.mxu0 0.0
  %102 = vmatpush1.msra.mxu0 0.0
  %103 = vmatprep.subr.mxu0 0.0
  %104 = vmatpush1.msra.mxu0 0.0
  %105 = vmatprep.subr.mxu0 0.0
  %106 = vmatpush1.msra.mxu0 0.0
  %107 = vmatprep.subr.mxu0 0.0
  %108 = vmatpush1.msra.mxu0 0.0
  %109 = vmatprep.subr.mxu0 0.0
  %110 = vmatpush1.msra.mxu0 0.0
  %111 = vmatprep.subr.mxu0 0.0
  %112 = vmatpush1.msra.mxu0 0.0
  %113 = vmatprep.subr.mxu0 0.0
  %114 = vmatpush1.msra.mxu0 0.0
  %115 = vmatprep.mubr.f32.mxu0 0.0
  %116 = vmatmul.mubr.f32.gmra.mrb[0].mxu0 %v45
  %v117 = vpop.f32.mrb[0].mxu0
  %v118 = vadd.f32 0.0, %v117
  %v119 = vpop.f32.mrb[0].mxu0
  %120 = vdwg.mxu0
  %vm121 = vcmask 80896
  %v123 = vsel %vm121, %v38, 0
  %vm125 = vcmask 1041408
  %v127 = vsel %vm125, %v40, 0
  %129 = vmatprep.subr.mxu0 0.0
  %130 = vmatpush1.msra.mxu0 %v39
  %131 = vmatprep.subr.mxu0 0.0
  %132 = vmatpush1.msra.mxu0 %v127
  %133 = vmatprep.subr.mxu0 0.0
  %134 = vmatpush1.msra.mxu0 0.0
  %135 = vmatprep.subr.mxu0 0.0
  %136 = vmatpush1.msra.mxu0 0.0
  %137 = vmatprep.subr.mxu0 0.0
  %138 = vmatpush1.msra.mxu0 0.0
  %139 = vmatprep.subr.mxu0 0.0
  %140 = vmatpush1.msra.mxu0 0.0
  %141 = vmatprep.subr.mxu0 0.0
  %142 = vmatpush1.msra.mxu0 0.0
  %143 = vmatprep.subr.mxu0 0.0
  %144 = vmatpush1.msra.mxu0 0.0
  %145 = vmatprep.subr.mxu0 0.0
  %146 = vmatpush1.msra.mxu0 0.0
  %147 = vmatprep.subr.mxu0 0.0
  %148 = vmatpush1.msra.mxu0 0.0
  %149 = vmatprep.subr.mxu0 0.0
  %150 = vmatpush1.msra.mxu0 0.0
  %151 = vmatprep.subr.mxu0 0.0
  %152 = vmatpush1.msra.mxu0 0.0
  %153 = vmatprep.subr.mxu0 0.0
  %154 = vmatpush1.msra.mxu0 0.0
  %155 = vmatprep.subr.mxu0 0.0
  %156 = vmatpush1.msra.mxu0 0.0
  %157 = vmatprep.subr.mxu0 0.0
  %158 = vmatpush1.msra.mxu0 0.0
  %159 = vmatprep.subr.mxu0 0.0
  %160 = vmatpush1.msra.mxu0 0.0
  %161 = vmatprep.subr.mxu0 0.0
  %162 = vmatpush1.msra.mxu0 0.0
  %163 = vmatprep.subr.mxu0 0.0
  %164 = vmatpush1.msra.mxu0 0.0
  %165 = vmatprep.subr.mxu0 0.0
  %166 = vmatpush1.msra.mxu0 0.0
  %167 = vmatprep.subr.mxu0 0.0
  %168 = vmatpush1.msra.mxu0 0.0
  %169 = vmatprep.subr.mxu0 0.0
  %170 = vmatpush1.msra.mxu0 0.0
  %171 = vmatprep.subr.mxu0 0.0
  %172 = vmatpush1.msra.mxu0 0.0
  %173 = vmatprep.subr.mxu0 0.0
  %174 = vmatpush1.msra.mxu0 0.0
  %175 = vmatprep.subr.mxu0 0.0
  %176 = vmatpush1.msra.mxu0 0.0
  %177 = vmatprep.subr.mxu0 0.0
  %178 = vmatpush1.msra.mxu0 0.0
  %179 = vmatprep.subr.mxu0 0.0
  %180 = vmatpush1.msra.mxu0 0.0
  %181 = vmatprep.subr.mxu0 0.0
  %182 = vmatpush1.msra.mxu0 0.0
  %183 = vmatprep.subr.mxu0 0.0
  %184 = vmatpush1.msra.mxu0 0.0
  %185 = vmatprep.subr.mxu0 0.0
  %186 = vmatpush1.msra.mxu0 0.0
  %187 = vmatprep.subr.mxu0 0.0
  %188 = vmatpush1.msra.mxu0 0.0
  %189 = vmatprep.subr.mxu0 0.0
  %190 = vmatpush1.msra.mxu0 0.0
  %191 = vmatprep.subr.mxu0 0.0
  %192 = vmatpush1.msra.mxu0 0.0
  %193 = vmatprep.mubr.f32.mxu0 0.0
  %194 = vmatmul.mubr.f32.gmra.mrb[0].mxu0 %v123
  %v195 = vpop.f32.mrb[0].mxu0
  %v196 = vadd.f32 %v118, %v195
  %v197 = vpop.f32.mrb[0].mxu0
  %198 = vdwg.mxu0
  %v199 = vld [vmem:[%s4] sm:$0x1]
  %v201 = vlaneseq
  %v202 = vshrl.u32 %v201, 7
  %v203 = vsub.s32 0, %v202
  %v204 = vrot.slane %v199, %v203
  %v206 = vadd.f32 %v196, %v204
  %v207 = vmax.f32 %v206, 0.0
  %v208 = vld [vmem:[%s5] sm:$0xff]
  %v209 = vld [vmem:[%s5 + $0x8] sm:$0xff]
  %v210 = vld [vmem:[%s5 + $0x10] sm:$0xff]
  %v211 = vld [vmem:[%s5 + $0x18] sm:$0xff]
  %v212 = vld [vmem:[%s5 + $0x20] sm:$0xff]
  %v213 = vld [vmem:[%s5 + $0x28] sm:$0xff]
  %v214 = vld [vmem:[%s5 + $0x30] sm:$0xff]
  %v215 = vld [vmem:[%s5 + $0x38] sm:$0xff]
  %v216 = vld [vmem:[%s6] sm:$0x1]
  %v218 = vlaneseq
  %v219 = vshrl.u32 %v218, 7
  %v220 = vsub.s32 0, %v219
  %v221 = vrot.slane %v216, %v220
  %vm223 = vcmask 523264
  %v225 = vsel %vm223, %v207, 0
  %227 = vmatprep.subr.mxu0 0.0
  %228 = vmatpush1.msra.mxu0 %v208
  %229 = vmatprep.subr.mxu0 0.0
  %230 = vmatpush1.msra.mxu0 %v209
  %231 = vmatprep.subr.mxu0 0.0
  %232 = vmatpush1.msra.mxu0 %v210
  %233 = vmatprep.subr.mxu0 0.0
  %234 = vmatpush1.msra.mxu0 %v211
  %235 = vmatprep.subr.mxu0 0.0
  %236 = vmatpush1.msra.mxu0 %v212
  %237 = vmatprep.subr.mxu0 0.0
  %238 = vmatpush1.msra.mxu0 %v213
  %239 = vmatprep.subr.mxu0 0.0
  %240 = vmatpush1.msra.mxu0 %v214
  %241 = vmatprep.subr.mxu0 0.0
  %242 = vmatpush1.msra.mxu0 %v215
  %243 = vmatprep.subr.mxu0 0.0
  %244 = vmatpush1.msra.mxu0 0.0
  %245 = vmatprep.subr.mxu0 0.0
  %246 = vmatpush1.msra.mxu0 0.0
  %247 = vmatprep.subr.mxu0 0.0
  %248 = vmatpush1.msra.mxu0 0.0
  %249 = vmatprep.subr.mxu0 0.0
  %250 = vmatpush1.msra.mxu0 0.0
  %251 = vmatprep.subr.mxu0 0.0
  %252 = vmatpush1.msra.mxu0 0.0
  %253 = vmatprep.subr.mxu0 0.0
  %254 = vmatpush1.msra.mxu0 0.0
  %255 = vmatprep.subr.mxu0 0.0
  %256 = vmatpush1.msra.mxu0 0.0
  %257 = vmatprep.subr.mxu0 0.0
  %258 = vmatpush1.msra.mxu0 0.0
  %259 = vmatprep.subr.mxu0 0.0
  %260 = vmatpush1.msra.mxu0 0.0
  %261 = vmatprep.subr.mxu0 0.0
  %262 = vmatpush1.msra.mxu0 0.0
  %263 = vmatprep.subr.mxu0 0.0
  %264 = vmatpush1.msra.mxu0 0.0
  %265 = vmatprep.subr.mxu0 0.0
  %266 = vmatpush1.msra.mxu0 0.0
  %267 = vmatprep.subr.mxu0 0.0
  %268 = vmatpush1.msra.mxu0 0.0
  %269 = vmatprep.subr.mxu0 0.0
  %270 = vmatpush1.msra.mxu0 0.0
  %271 = vmatprep.subr.mxu0 0.0
  %272 = vmatpush1.msra.mxu0 0.0
  %273 = vmatprep.subr.mxu0 0.0
  %274 = vmatpush1.msra.mxu0 0.0
  %275 = vmatprep.subr.mxu0 0.0
  %276 = vmatpush1.msra.mxu0 0.0
  %277 = vmatprep.subr.mxu0 0.0
  %278 = vmatpush1.msra.mxu0 0.0
  %279 = vmatprep.subr.mxu0 0.0
  %280 = vmatpush1.msra.mxu0 0.0
  %281 = vmatprep.subr.mxu0 0.0
  %282 = vmatpush1.msra.mxu0 0.0
  %283 = vmatprep.subr.mxu0 0.0
  %284 = vmatpush1.msra.mxu0 0.0
  %285 = vmatprep.subr.mxu0 0.0
  %286 = vmatpush1.msra.mxu0 0.0
  %287 = vmatprep.subr.mxu0 0.0
  %288 = vmatpush1.msra.mxu0 0.0
  %289 = vmatprep.subr.mxu0 0.0
  %290 = vmatpush1.msra.mxu0 0.0
  %291 = vmatprep.mubr.f32.mxu0 0.0
  %292 = vmatmul.mubr.f32.gmra.mrb[0].mxu0 %v225
  %v293 = vpop.f32.mrb[0].mxu0
  %v294 = vadd.f32 %v221, %v293
  %v295 = vpop.f32.mrb[0].mxu0
  %296 = vdwg.mxu0
  %v297 = vmax.f32 %v294, 0.0
  %v298 = vld [vmem:[%s7] sm:$0xff]
  %v299 = vld [vmem:[%s7 + $0x8] sm:$0xff]
  %v300 = vld [vmem:[%s7 + $0x10] sm:$0xff]
  %v301 = vld [vmem:[%s7 + $0x18] sm:$0xff]
  %v302 = vld [vmem:[%s7 + $0x20] sm:$0xff]
  %v303 = vld [vmem:[%s7 + $0x28] sm:$0xff]
  %v304 = vld [vmem:[%s7 + $0x30] sm:$0xff]
  %v305 = vld [vmem:[%s7 + $0x38] sm:$0xff]
  %v306 = vld [vmem:[%s8] sm:$0x1]
  %v308 = vlaneseq
  %v309 = vshrl.u32 %v308, 7
  %v310 = vsub.s32 0, %v309
  %v311 = vrot.slane %v306, %v310
  %v314 = vsel %vm223, %v297, 0
  %316 = vmatprep.subr.mxu0 0.0
  %317 = vmatpush1.msra.mxu0 %v298
  %318 = vmatprep.subr.mxu0 0.0
  %319 = vmatpush1.msra.mxu0 %v299
  %320 = vmatprep.subr.mxu0 0.0
  %321 = vmatpush1.msra.mxu0 %v300
  %322 = vmatprep.subr.mxu0 0.0
  %323 = vmatpush1.msra.mxu0 %v301
  %324 = vmatprep.subr.mxu0 0.0
  %325 = vmatpush1.msra.mxu0 %v302
  %326 = vmatprep.subr.mxu0 0.0
  %327 = vmatpush1.msra.mxu0 %v303
  %328 = vmatprep.subr.mxu0 0.0
  %329 = vmatpush1.msra.mxu0 %v304
  %330 = vmatprep.subr.mxu0 0.0
  %331 = vmatpush1.msra.mxu0 %v305
  %332 = vmatprep.subr.mxu0 0.0
  %333 = vmatpush1.msra.mxu0 0.0
  %334 = vmatprep.subr.mxu0 0.0
  %335 = vmatpush1.msra.mxu0 0.0
  %336 = vmatprep.subr.mxu0 0.0
  %337 = vmatpush1.msra.mxu0 0.0
  %338 = vmatprep.subr.mxu0 0.0
  %339 = vmatpush1.msra.mxu0 0.0
  %340 = vmatprep.subr.mxu0 0.0
  %341 = vmatpush1.msra.mxu0 0.0
  %342 = vmatprep.subr.mxu0 0.0
  %343 = vmatpush1.msra.mxu0 0.0
  %344 = vmatprep.subr.mxu0 0.0
  %345 = vmatpush1.msra.mxu0 0.0
  %346 = vmatprep.subr.mxu0 0.0
  %347 = vmatpush1.msra.mxu0 0.0
  %348 = vmatprep.subr.mxu0 0.0
  %349 = vmatpush1.msra.mxu0 0.0
  %350 = vmatprep.subr.mxu0 0.0
  %351 = vmatpush1.msra.mxu0 0.0
  %352 = vmatprep.subr.mxu0 0.0
  %353 = vmatpush1.msra.mxu0 0.0
  %354 = vmatprep.subr.mxu0 0.0
  %355 = vmatpush1.msra.mxu0 0.0
  %356 = vmatprep.subr.mxu0 0.0
  %357 = vmatpush1.msra.mxu0 0.0
  %358 = vmatprep.subr.mxu0 0.0
  %359 = vmatpush1.msra.mxu0 0.0
  %360 = vmatprep.subr.mxu0 0.0
  %361 = vmatpush1.msra.mxu0 0.0
  %362 = vmatprep.subr.mxu0 0.0
  %363 = vmatpush1.msra.mxu0 0.0
  %364 = vmatprep.subr.mxu0 0.0
  %365 = vmatpush1.msra.mxu0 0.0
  %366 = vmatprep.subr.mxu0 0.0
  %367 = vmatpush1.msra.mxu0 0.0
  %368 = vmatprep.subr.mxu0 0.0
  %369 = vmatpush1.msra.mxu0 0.0
  %370 = vmatprep.subr.mxu0 0.0
  %371 = vmatpush1.msra.mxu0 0.0
  %372 = vmatprep.subr.mxu0 0.0
  %373 = vmatpush1.msra.mxu0 0.0
  %374 = vmatprep.subr.mxu0 0.0
  %375 = vmatpush1.msra.mxu0 0.0
  %376 = vmatprep.subr.mxu0 0.0
  %377 = vmatpush1.msra.mxu0 0.0
  %378 = vmatprep.subr.mxu0 0.0
  %379 = vmatpush1.msra.mxu0 0.0
  %380 = vmatprep.mubr.f32.mxu0 0.0
  %381 = vmatmul.mubr.f32.gmra.mrb[0].mxu0 %v314
  %v382 = vpop.f32.mrb[0].mxu0
  %v383 = vadd.f32 %v311, %v382
  %v384 = vpop.f32.mrb[0].mxu0
  %385 = vdwg.mxu0
  %v386 = vmax.f32 %v383, 0.0
  %v387 = vld [vmem:[%s9] sm:$0xff]
  %v388 = vld [vmem:[%s9 + $0x8] sm:$0xff]
  %v389 = vld [vmem:[%s9 + $0x10] sm:$0xff]
  %v390 = vld [vmem:[%s9 + $0x18] sm:$0xff]
  %v391 = vld [vmem:[%s9 + $0x20] sm:$0xff]
  %v392 = vld [vmem:[%s9 + $0x28] sm:$0xff]
  %v393 = vld [vmem:[%s9 + $0x30] sm:$0xff]
  %v394 = vld [vmem:[%s9 + $0x38] sm:$0xff]
  %v395 = vld [vmem:[%s10] sm:$0x1]
  %v397 = vlaneseq
  %v398 = vshrl.u32 %v397, 7
  %v399 = vsub.s32 0, %v398
  %v400 = vrot.slane %v395, %v399
  %v403 = vsel %vm223, %v386, 0
  %405 = vmatprep.subr.mxu0 0.0
  %406 = vmatpush1.msra.mxu0 %v387
  %407 = vmatprep.subr.mxu0 0.0
  %408 = vmatpush1.msra.mxu0 %v388
  %409 = vmatprep.subr.mxu0 0.0
  %410 = vmatpush1.msra.mxu0 %v389
  %411 = vmatprep.subr.mxu0 0.0
  %412 = vmatpush1.msra.mxu0 %v390
  %413 = vmatprep.subr.mxu0 0.0
  %414 = vmatpush1.msra.mxu0 %v391
  %415 = vmatprep.subr.mxu0 0.0
  %416 = vmatpush1.msra.mxu0 %v392
  %417 = vmatprep.subr.mxu0 0.0
  %418 = vmatpush1.msra.mxu0 %v393
  %419 = vmatprep.subr.mxu0 0.0
  %420 = vmatpush1.msra.mxu0 %v394
  %421 = vmatprep.subr.mxu0 0.0
  %422 = vmatpush1.msra.mxu0 0.0
  %423 = vmatprep.subr.mxu0 0.0
  %424 = vmatpush1.msra.mxu0 0.0
  %425 = vmatprep.subr.mxu0 0.0
  %426 = vmatpush1.msra.mxu0 0.0
  %427 = vmatprep.subr.mxu0 0.0
  %428 = vmatpush1.msra.mxu0 0.0
  %429 = vmatprep.subr.mxu0 0.0
  %430 = vmatpush1.msra.mxu0 0.0
  %431 = vmatprep.subr.mxu0 0.0
  %432 = vmatpush1.msra.mxu0 0.0
  %433 = vmatprep.subr.mxu0 0.0
  %434 = vmatpush1.msra.mxu0 0.0
  %435 = vmatprep.subr.mxu0 0.0
  %436 = vmatpush1.msra.mxu0 0.0
  %437 = vmatprep.subr.mxu0 0.0
  %438 = vmatpush1.msra.mxu0 0.0
  %439 = vmatprep.subr.mxu0 0.0
  %440 = vmatpush1.msra.mxu0 0.0
  %441 = vmatprep.subr.mxu0 0.0
  %442 = vmatpush1.msra.mxu0 0.0
  %443 = vmatprep.subr.mxu0 0.0
  %444 = vmatpush1.msra.mxu0 0.0
  %445 = vmatprep.subr.mxu0 0.0
  %446 = vmatpush1.msra.mxu0 0.0
  %447 = vmatprep.subr.mxu0 0.0
  %448 = vmatpush1.msra.mxu0 0.0
  %449 = vmatprep.subr.mxu0 0.0
  %450 = vmatpush1.msra.mxu0 0.0
  %451 = vmatprep.subr.mxu0 0.0
  %452 = vmatpush1.msra.mxu0 0.0
  %453 = vmatprep.subr.mxu0 0.0
  %454 = vmatpush1.msra.mxu0 0.0
  %455 = vmatprep.subr.mxu0 0.0
  %456 = vmatpush1.msra.mxu0 0.0
  %457 = vmatprep.subr.mxu0 0.0
  %458 = vmatpush1.msra.mxu0 0.0
  %459 = vmatprep.subr.mxu0 0.0
  %460 = vmatpush1.msra.mxu0 0.0
  %461 = vmatprep.subr.mxu0 0.0
  %462 = vmatpush1.msra.mxu0 0.0
  %463 = vmatprep.subr.mxu0 0.0
  %464 = vmatpush1.msra.mxu0 0.0
  %465 = vmatprep.subr.mxu0 0.0
  %466 = vmatpush1.msra.mxu0 0.0
  %467 = vmatprep.subr.mxu0 0.0
  %468 = vmatpush1.msra.mxu0 0.0
  %469 = vmatprep.mubr.f32.mxu0 0.0
  %470 = vmatmul.mubr.f32.gmra.mrb[0].mxu0 %v403
  %v471 = vpop.f32.mrb[0].mxu0
  %v472 = vadd.f32 %v400, %v471
  %v473 = vpop.f32.mrb[0].mxu0
  %474 = vdwg.mxu0
  %v475 = vlaneseq
  %v476 = vand.u32 %v475, 127
  %vm477 = vcmp.lt.s32.totalorder %v476, 64
  %v478 = vtanh.pop %v472
  %v479 = vsel %vm477, %v478, %v472
  %480 = vst [vmem:[%s11] sm:$0xff] %v479
  // Predicated region
  $region46: #{actor_forward.1} parent=0 // pred_check
    _
  $region47: #{actor_forward.1} parent=0 // pred_check_branch
    %482 = sbr.rel (0) target = $region49
  $region48: #{actor_forward.1} parent=0 // pred_region
    _
  $region49: #{actor_forward.1} parent=0 // pred_fallthru
    _
  // Predicated region
  $region50: #{actor_forward.1} parent=0 // pred_check
    _
  $region51: #{actor_forward.1} parent=0 // pred_check_branch
    %484 = sbr.rel (0) target = $region53
  $region52: #{actor_forward.1} parent=0 // pred_region
    _
  $region53: #{actor_forward.1} parent=0 // pred_fallthru
    _

</llo_original>
